<compile_context>
chip_gen: v5e
topology: v5e:2x2
jax: 0.10.0
libtpu: 0.0.40
codegen_flags: <defaults>
</compile_context>

<pallas_src>
import jax
import jax.numpy as jnp
from jax.experimental import pallas as pl
from jax.experimental.pallas import tpu as pltpu

LANE = 128  # lane-dense padding target for hidden feature dimensions


def _round_up(x, m):
    return (x + m - 1) // m * m


def mlp_kernel(x_ref, w0_ref, w_ref, b_ref, o_ref):
    # x_ref : (tile_m, in_features) f32   -- natural width, no padded HBM copy
    # w0_ref: (in_features, PAD)    bf16  -- first layer, natural K, resident
    # w_ref : (L-1, PAD, PAD)       bf16  -- remaining layers, resident
    # b_ref : (L, 1, PAD)           f32   -- all biases, resident
    # o_ref : (tile_m, out_features) f32  -- narrow output store
    n_rest = w_ref.shape[0]
    out_features = o_ref.shape[-1]

    h = jnp.dot(x_ref[...].astype(jnp.bfloat16), w0_ref[...],
                preferred_element_type=jnp.float32) + b_ref[0]
    # Static Python loop over the (few) remaining layers.
    # TODO(synk): if this MLP ever gets deep, switch to
    # lax.fori_loop(..., unroll=True) indexing w_ref[i] to bound vreg liveness.
    for i in range(n_rest):
        h = jnp.maximum(h, 0.0)                      # ReLU in f32
        h = jnp.dot(h.astype(jnp.bfloat16), w_ref[i],
                    preferred_element_type=jnp.float32) + b_ref[i + 1]
    # Padded lanes of h are exact zeros (zero-padded weights/biases), so the
    # first `out_features` lanes are the exact module output.
    o_ref[...] = h[:, :out_features].astype(o_ref.dtype)


def init_params(key, input_size, layer_sizes, output_size):
    """Deterministic synthetic init (shapes match the PyTorch module); f32 master."""
    sizes = [input_size] + list(layer_sizes) + [output_size]
    params = []
    for i in range(len(sizes) - 1):
        key, kw, kb = jax.random.split(key, 3)
        fan_in, fan_out = sizes[i], sizes[i + 1]
        bound = 1.0 / jnp.sqrt(fan_in)
        # stored as [in, out] so the kernel computes x @ W + b (== x @ W_pt.T + b)
        w = jax.random.uniform(kw, (fan_in, fan_out), jnp.float32, -bound, bound)
        b = jax.random.uniform(kb, (1, fan_out), jnp.float32, -bound, bound)
        params.append((w, b))
    return params


def pack_params(params):
    """Pack: first-layer weight at natural K, remaining layers as a lane-padded
    bf16 slab, all biases as one f32 slab. Zero padding keeps the math exact."""
    n_layers = len(params)
    dims = [w.shape[1] for w, _ in params] + [w.shape[0] for w, _ in params[1:]]
    pad = _round_up(max(dims + [LANE]), LANE)

    w0_src, _ = params[0]
    in_features = w0_src.shape[0]
    w0 = jnp.zeros((in_features, pad), jnp.bfloat16)
    w0 = w0.at[:, : w0_src.shape[1]].set(w0_src.astype(jnp.bfloat16))

    w_rest = jnp.zeros((n_layers - 1, pad, pad), jnp.bfloat16)
    for i, (w, _) in enumerate(params[1:]):
        w_rest = w_rest.at[i, : w.shape[0], : w.shape[1]].set(w.astype(jnp.bfloat16))

    b_packed = jnp.zeros((n_layers, 1, pad), jnp.float32)
    for i, (_, b) in enumerate(params):
        b_packed = b_packed.at[i, 0, : b.shape[-1]].set(jnp.reshape(b, (-1,)))

    return w0, w_rest, b_packed


def _choose_tile_m(batch, tile_m_max=1024):
    # >= 2 grid steps once the batch is non-trivial so v7x's two TensorCores
    # both get work on the "parallel" axis; tiny batches keep a single step.
    # Tiles are (near-)equal multiples of 8 so tail padding is <= 7 rows/tile.
    min_tiles = 2 if batch >= 64 else 1
    n_tiles = max(pl.cdiv(batch, tile_m_max), min_tiles)
    tile_m = _round_up(pl.cdiv(batch, n_tiles), 8)   # f32 sublane multiple
    return max(8, min(tile_m, tile_m_max))


def mlp_forward(x, w0, w_rest, b_packed, out_features, *, tile_m_max=1024):
    batch, in_features = x.shape
    n_rest, pad, _ = w_rest.shape
    n_layers = n_rest + 1
    tile_m = _choose_tile_m(batch, tile_m_max)

    return pl.pallas_call(
        mlp_kernel,
        out_shape=jax.ShapeDtypeStruct((batch, out_features), jnp.float32),
        grid=(pl.cdiv(batch, tile_m),),
        in_specs=[
            pl.BlockSpec((tile_m, in_features), lambda i: (i, 0)),
            pl.BlockSpec((in_features, pad), lambda i: (0, 0)),       # resident
            pl.BlockSpec((n_rest, pad, pad), lambda i: (0, 0, 0)),    # resident
            pl.BlockSpec((n_layers, 1, pad), lambda i: (0, 0, 0)),    # resident
        ],
        out_specs=pl.BlockSpec((tile_m, out_features), lambda i: (i, 0)),
        compiler_params=pltpu.CompilerParams(
            dimension_semantics=("parallel",)),       # megacore split on v7x
    )(x.astype(jnp.float32), w0, w_rest, b_packed)


def reference_forward_bf16(x, params):
    """Pure-JAX reference with step-identical numerics to the kernel."""
    w0, b0 = params[0]
    h = jnp.dot(x.astype(jnp.bfloat16), w0.astype(jnp.bfloat16),
                preferred_element_type=jnp.float32) + b0
    for w, b in params[1:]:
        h = jnp.maximum(h, 0.0)
        h = jnp.dot(h.astype(jnp.bfloat16), w.astype(jnp.bfloat16),
                    preferred_element_type=jnp.float32) + b
    return h


def reference_forward_f32(x, params):
    """Exact f32 math of the original PyTorch module."""
    h = x
    for i, (w, b) in enumerate(params):
        h = h @ w + b
        if i < len(params) - 1:
            h = jnp.maximum(h, 0.0)
    return h


if __name__ == "__main__":
    input_size = 11
    layer_sizes = [32, 16]
    output_size = 2

    key = jax.random.PRNGKey(0)
    key, kx = jax.random.split(key)

    params = init_params(key, input_size, layer_sizes, output_size)
    w0, w_rest, b_packed = pack_params(params)   # pack once, reuse every call

    # Small shipped shape (single grid step).
    batch = 8
    x = jax.random.normal(kx, (batch, input_size), jnp.float32)
    out = jax.block_until_ready(mlp_forward(x, w0, w_rest, b_packed, output_size))
    assert out.shape == (batch, output_size)

    # Kernel matches a reference with identical numerics (bf16 matmul inputs,
    # f32 accumulation / bias / ReLU). NOTE: bf16 weights/activations are an
    # intentional precision trade-off vs. the f32 PyTorch module.
    ref = reference_forward_bf16(x, params)
    assert jnp.allclose(out, ref, atol=1e-4, rtol=1e-4)
    ref_f32 = reference_forward_f32(x, params)
    assert jnp.allclose(out, ref_f32, atol=1e-1, rtol=1e-1)

    # Multi-tile path: grid >= 2 so both v7x TensorCores participate.
    batch2 = 256
    key, kx2 = jax.random.split(key)
    x2 = jax.random.normal(kx2, (batch2, input_size), jnp.float32)
    out2 = jax.block_until_ready(mlp_forward(x2, w0, w_rest, b_packed, output_size))
    assert out2.shape == (batch2, output_size)
    ref2 = reference_forward_bf16(x2, params)
    assert jnp.allclose(out2, ref2, atol=1e-4, rtol=1e-4)

    print("KERNEL_OK")
</pallas_src>

<mosaic_0001>
module attributes {stable_mosaic.version = 11 : i64} {
  func.func @mlp_kernel(%arg0: i32, %arg1: memref<8x11xf32, #tpu.memory_space<vmem>>, %arg2: memref<11x128xbf16, #tpu.memory_space<vmem>>, %arg3: memref<2x128x128xbf16, #tpu.memory_space<vmem>>, %arg4: memref<3x1x128xf32, #tpu.memory_space<vmem>>, %arg5: memref<8x2xf32, #tpu.memory_space<vmem>>) attributes {dimension_semantics = [#tpu.dimension_semantics<parallel>], iteration_bounds = array<i64: 1>, scalar_prefetch = 0 : i64, scratch_operands = 0 : i64, tpu.core_type = #tpu.core_type<tc>, window_params = [{transform_indices = @transform_0, window_bounds = array<i64: 8, 11>}, {pipeline_mode = #tpu.pipeline_mode<synchronous>, transform_indices = @transform_1, window_bounds = array<i64: 11, 128>}, {pipeline_mode = #tpu.pipeline_mode<synchronous>, transform_indices = @transform_2, window_bounds = array<i64: 2, 128, 128>}, {pipeline_mode = #tpu.pipeline_mode<synchronous>, transform_indices = @transform_3, window_bounds = array<i64: 3, 1, 128>}, {transform_indices = @transform_4, window_bounds = array<i64: 8, 2>}]} {
    %c0 = arith.constant 0 : index
    %c0_0 = arith.constant 0 : index
    %0 = vector.load %arg1[%c0, %c0_0] : memref<8x11xf32, #tpu.memory_space<vmem>>, vector<8x11xf32>
    %1 = arith.truncf %0 : vector<8x11xf32> to vector<8x11xbf16>
    %c0_1 = arith.constant 0 : index
    %c0_2 = arith.constant 0 : index
    %2 = vector.load %arg2[%c0_1, %c0_2] : memref<11x128xbf16, #tpu.memory_space<vmem>>, vector<11x128xbf16>
    %cst = arith.constant dense<0.000000e+00> : vector<8x128xf32>
    %3 = tpu.matmul %1, %2, %cst {dimension_numbers = #tpu.dot_dimension_numbers<[1], [0], [0], [1], [0, 0, 1, 1], [], []>} : vector<8x11xbf16>, vector<11x128xbf16>, vector<8x128xf32> -> vector<8x128xf32>
    %c0_3 = arith.constant 0 : index
    %c0_4 = arith.constant 0 : index
    %c0_5 = arith.constant 0 : index
    %4 = vector.load %arg4[%c0_3, %c0_4, %c0_5] : memref<3x1x128xf32, #tpu.memory_space<vmem>>, vector<1x1x128xf32>
    %5 = vector.shape_cast %4 : vector<1x1x128xf32> to vector<1x128xf32>
    %6 = vector.broadcast %5 : vector<1x128xf32> to vector<8x128xf32>
    %7 = arith.addf %3, %6 : vector<8x128xf32>
    %cst_6 = arith.constant 0.000000e+00 : f32
    %8 = vector.broadcast %cst_6 : f32 to vector<8x128xf32>
    %9 = arith.maximumf %7, %8 : vector<8x128xf32>
    %10 = arith.truncf %9 : vector<8x128xf32> to vector<8x128xbf16>
    %c0_7 = arith.constant 0 : index
    %c0_8 = arith.constant 0 : index
    %c0_9 = arith.constant 0 : index
    %11 = vector.load %arg3[%c0_7, %c0_8, %c0_9] : memref<2x128x128xbf16, #tpu.memory_space<vmem>>, vector<1x128x128xbf16>
    %12 = vector.shape_cast %11 : vector<1x128x128xbf16> to vector<128x128xbf16>
    %cst_10 = arith.constant dense<0.000000e+00> : vector<8x128xf32>
    %13 = tpu.matmul %10, %12, %cst_10 {dimension_numbers = #tpu.dot_dimension_numbers<[1], [0], [0], [1], [0, 0, 1, 1], [], []>} : vector<8x128xbf16>, vector<128x128xbf16>, vector<8x128xf32> -> vector<8x128xf32>
    %c1 = arith.constant 1 : index
    %c0_11 = arith.constant 0 : index
    %c0_12 = arith.constant 0 : index
    %14 = vector.load %arg4[%c1, %c0_11, %c0_12] : memref<3x1x128xf32, #tpu.memory_space<vmem>>, vector<1x1x128xf32>
    %15 = vector.shape_cast %14 : vector<1x1x128xf32> to vector<1x128xf32>
    %16 = vector.broadcast %15 : vector<1x128xf32> to vector<8x128xf32>
    %17 = arith.addf %13, %16 : vector<8x128xf32>
    %cst_13 = arith.constant 0.000000e+00 : f32
    %18 = vector.broadcast %cst_13 : f32 to vector<8x128xf32>
    %19 = arith.maximumf %17, %18 : vector<8x128xf32>
    %20 = arith.truncf %19 : vector<8x128xf32> to vector<8x128xbf16>
    %c1_14 = arith.constant 1 : index
    %c0_15 = arith.constant 0 : index
    %c0_16 = arith.constant 0 : index
    %21 = vector.load %arg3[%c1_14, %c0_15, %c0_16] : memref<2x128x128xbf16, #tpu.memory_space<vmem>>, vector<1x128x128xbf16>
    %22 = vector.shape_cast %21 : vector<1x128x128xbf16> to vector<128x128xbf16>
    %cst_17 = arith.constant dense<0.000000e+00> : vector<8x128xf32>
    %23 = tpu.matmul %20, %22, %cst_17 {dimension_numbers = #tpu.dot_dimension_numbers<[1], [0], [0], [1], [0, 0, 1, 1], [], []>} : vector<8x128xbf16>, vector<128x128xbf16>, vector<8x128xf32> -> vector<8x128xf32>
    %c2 = arith.constant 2 : index
    %c0_18 = arith.constant 0 : index
    %c0_19 = arith.constant 0 : index
    %24 = vector.load %arg4[%c2, %c0_18, %c0_19] : memref<3x1x128xf32, #tpu.memory_space<vmem>>, vector<1x1x128xf32>
    %25 = vector.shape_cast %24 : vector<1x1x128xf32> to vector<1x128xf32>
    %26 = vector.broadcast %25 : vector<1x128xf32> to vector<8x128xf32>
    %27 = arith.addf %23, %26 : vector<8x128xf32>
    %28 = vector.extract_strided_slice %27 {offsets = [0, 0], sizes = [8, 2], strides = [1, 1]} : vector<8x128xf32> to vector<8x2xf32>
    %c0_20 = arith.constant 0 : index
    %c0_21 = arith.constant 0 : index
    %29 = vector.load %arg5[%c0_20, %c0_21] : memref<8x2xf32, #tpu.memory_space<vmem>>, vector<8x2xf32>
    tpu.vector_store %arg5[%c0_20, %c0_21], %28 {strides = array<i32>} : memref<8x2xf32, #tpu.memory_space<vmem>>, vector<8x2xf32>,
    return
  }
  func.func @transform_0(%arg0: i32) -> (i32, i32) {
    %c0_i32 = arith.constant 0 : i32
    %c0_i32_0 = arith.constant 0 : i32
    return %arg0, %c0_i32 : i32, i32
  }
  func.func @transform_1(%arg0: i32) -> (i32, i32) {
    %c0_i32 = arith.constant 0 : i32
    %c0_i32_0 = arith.constant 0 : i32
    %c0_i32_1 = arith.constant 0 : i32
    return %c0_i32, %c0_i32_0 : i32, i32
  }
  func.func @transform_2(%arg0: i32) -> (i32, i32, i32) {
    %c0_i32 = arith.constant 0 : i32
    %c0_i32_0 = arith.constant 0 : i32
    %c0_i32_1 = arith.constant 0 : i32
    %c0_i32_2 = arith.constant 0 : i32
    return %c0_i32, %c0_i32_0, %c0_i32_1 : i32, i32, i32
  }
  func.func @transform_3(%arg0: i32) -> (i32, i32, i32) {
    %c0_i32 = arith.constant 0 : i32
    %c0_i32_0 = arith.constant 0 : i32
    %c0_i32_1 = arith.constant 0 : i32
    %c0_i32_2 = arith.constant 0 : i32
    return %c0_i32, %c0_i32_0, %c0_i32_1 : i32, i32, i32
  }
  func.func @transform_4(%arg0: i32) -> (i32, i32) {
    %c0_i32 = arith.constant 0 : i32
    %c0_i32_0 = arith.constant 0 : i32
    return %arg0, %c0_i32 : i32, i32
  }
}

</mosaic_0001>

<llo_original>
// kernel: tpu_custom_call.1
$region0: #{tpu_custom_call.1}
  #allocation0 [shape = 'u32[]', space=smem, size = 0x4, offset = 0x4, fixed_abs, tag = 'smem constant byte address 0x4 - core index']
  #allocation1 [shape = 'u32[72,128]{1,0:T(1,128)}', space=vmem, size = 0x9000, scoped, tag = 'internal scratch']
  %s0 = inlined_call_operand.hbm [shape: f32[8,11], index: 0, kind: input, shape index: {}]
  %s1 = inlined_call_operand.hbm [shape: bf16[11,128], index: 1, kind: input, shape index: {}]
  %s2 = inlined_call_operand.hbm [shape: bf16[2,128,128], index: 2, kind: input, shape index: {}]
  %s3 = inlined_call_operand.hbm [shape: f32[3,1,128], index: 3, kind: input, shape index: {}]
  %s4 = inlined_call_operand.vmem [shape: f32[8,2], index: 4, kind: output, shape index: {}]
  %s5 = sld [smem:[#allocation0]]
  $region42: #{tpu_custom_call.1} parent=0
    _
  %s7 = ssub.s32 1, %s5
  %s8 = scalar_select 0, %s7, %s5
  $region1: #{tpu_custom_call.1} parent=0
    #allocation2 [shape = 'u8[4096]{0}', space=vmem, size = 0x1000, scoped, tag = 'input window, operand 0, single buffered']
    #allocation3 [shape = 's32[1]{0}', space=sflag, size = 0x4, scoped, tag = 'scoped memory for tpu_custom_call.1']
    #allocation4 [shape = 'u8[4096]{0}', space=vmem, size = 0x1000, scoped, tag = 'input window, operand 1, single buffered']
    #allocation5 [shape = 's32[1]{0}', space=sflag, size = 0x4, scoped, tag = 'scoped memory for tpu_custom_call.1']
    #allocation6 [shape = 'u8[65536]{0}', space=vmem, size = 0x10000, scoped, tag = 'input window, operand 2, single buffered']
    #allocation7 [shape = 'u8[1536]{0}', space=vmem, size = 0x800, scoped, tag = 'input window, operand 3, single buffered']
    #allocation8 [shape = 's32[1]{0}', space=sflag, size = 0x4, scoped, tag = 'scoped memory for tpu_custom_call.1']
    %9 = vsyncpa [#allocation3], 0
    %10 = vsyncpa [#allocation5], 0
    %11 = vsyncpa [#allocation8], 0
    // Predicated region
    $region2: #{tpu_custom_call.1} parent=1 // pred_check
      _
    $region3: #{tpu_custom_call.1} parent=1 // pred_check_branch
      %13 = sbr.rel (0) target = $region5
    $region4: #{tpu_custom_call.1} parent=1 // pred_region
      %15 = vsyncadd [#allocation3], 0
      %s17 = sshll.u32 %s0, 4
      %s18 = int_to_ptr.hbm [resolvable:$true] %s17
      %s19 = sshll.u32 [#allocation2], 4
      %s20 = int_to_ptr.vmem [resolvable:$true] %s19
      %22 = dma.hbm_to_vmem [thread:$0]  %s18, 128, %s20, [#allocation3]
    $region5: #{tpu_custom_call.1} parent=1 // pred_fallthru
      _
    // Predicated region
    $region6: #{tpu_custom_call.1} parent=1 // pred_check
      _
    $region7: #{tpu_custom_call.1} parent=1 // pred_check_branch
      %24 = sbr.rel (0) target = $region9
    $region8: #{tpu_custom_call.1} parent=1 // pred_region
      %26 = vsyncadd [#allocation5], 0
      %s27 = sshll.u32 %s1, 4
      %s28 = int_to_ptr.hbm [resolvable:$true] %s27
      %s29 = sshll.u32 [#allocation4], 4
      %s30 = int_to_ptr.vmem [resolvable:$true] %s29
      %35 = dma.hbm_to_vmem [thread:$0]  %s28, 128, %s30, [#allocation5], 64, 64, 4
    $region9: #{tpu_custom_call.1} parent=1 // pred_fallthru
      _
    // Predicated region
    $region10: #{tpu_custom_call.1} parent=1 // pred_check
      _
    $region11: #{tpu_custom_call.1} parent=1 // pred_check_branch
      %37 = sbr.rel (0) target = $region13
    $region12: #{tpu_custom_call.1} parent=1 // pred_region
      %39 = vsyncadd [#allocation5], 0
      %s40 = sshll.u32 %s2, 4
      %s41 = int_to_ptr.hbm [resolvable:$true] %s40
      %s42 = sshll.u32 [#allocation6], 4
      %s43 = int_to_ptr.vmem [resolvable:$true] %s42
      %48 = dma.hbm_to_vmem [thread:$0]  %s41, 2048, %s43, [#allocation5], 64, 64, 4
    $region13: #{tpu_custom_call.1} parent=1 // pred_fallthru
      _
    // Predicated region
    $region14: #{tpu_custom_call.1} parent=1 // pred_check
      _
    $region15: #{tpu_custom_call.1} parent=1 // pred_check_branch
      %50 = sbr.rel (0) target = $region17
    $region16: #{tpu_custom_call.1} parent=1 // pred_region
      %52 = vsyncadd [#allocation8], 0
      %s53 = sshll.u32 %s3, 4
      %s54 = int_to_ptr.hbm [resolvable:$true] %s53
      %s55 = sshll.u32 [#allocation7], 4
      %s56 = int_to_ptr.vmem [resolvable:$true] %s55
      %61 = dma.hbm_to_vmem [thread:$0]  %s54, 48, %s56, [#allocation8], 16, 16, 1
    $region17: #{tpu_custom_call.1} parent=1 // pred_fallthru
      _
    // Predicated region
    $region18: #{tpu_custom_call.1} parent=1 // pred_check
      _
    $region19: #{tpu_custom_call.1} parent=1 // pred_check_branch
      %63 = sbr.rel (0) target = $region21
    $region20: #{tpu_custom_call.1} parent=1 // pred_region
      %65 = dma.done [#allocation3], 128
    $region21: #{tpu_custom_call.1} parent=1 // pred_fallthru
      _
    // Predicated region
    $region22: #{tpu_custom_call.1} parent=1 // pred_check
      _
    $region23: #{tpu_custom_call.1} parent=1 // pred_check_branch
      %67 = sbr.rel (0) target = $region25
    $region24: #{tpu_custom_call.1} parent=1 // pred_region
      %69 = dma.done [#allocation5], 128
    $region25: #{tpu_custom_call.1} parent=1 // pred_fallthru
      _
    // Predicated region
    $region26: #{tpu_custom_call.1} parent=1 // pred_check
      _
    $region27: #{tpu_custom_call.1} parent=1 // pred_check_branch
      %71 = sbr.rel (0) target = $region29
    $region28: #{tpu_custom_call.1} parent=1 // pred_region
      %73 = dma.done [#allocation5], 2048
    $region29: #{tpu_custom_call.1} parent=1 // pred_fallthru
      _
    // Predicated region
    $region30: #{tpu_custom_call.1} parent=1 // pred_check
      _
    $region31: #{tpu_custom_call.1} parent=1 // pred_check_branch
      %75 = sbr.rel (0) target = $region33
    $region32: #{tpu_custom_call.1} parent=1 // pred_region
      %77 = dma.done [#allocation8], 48
    $region33: #{tpu_custom_call.1} parent=1 // pred_fallthru
      _
    %v79 = vld [vmem:[#allocation2] sm:$0xff]
    %v80 = vpack.c.bf16 %v79, %v79
    %v81 = vld [vmem:[#allocation4] sm:$0xf]
    %v82 = vld [vmem:[#allocation4 + $0x4] sm:$0x3]
    %v83 = vld [vmem:[#allocation7] sm:$0x1]
    %v85 = vperm.slane %v83, 0
    %v89 = vunpack.c.l.b16 %v81
    %v90 = vunpack.c.l.b16 %v82
    %v91 = vpack.c.b16 %v90, %v89
    %vm92 = vcmask 89088
    %v94 = vsel %vm92, %v80, 0
    %vm96 = vcmask 1044480
    %vm97 = vcmask 1045504
    %v98 = vsel %vm96, 4294967295, 65535
    %v99 = vsel %vm97, %v98, 0
    %v101 = vand.u32 %v91, %v99
    %103 = vmatpush.bf16.msra.mxu0 0
    %104 = vmatpush.bf16.msra.mxu0 0
    %105 = vmatpush.bf16.msra.mxu0 0
    %106 = vmatpush.bf16.msra.mxu0 0
    %107 = vmatpush.bf16.msra.mxu0 0
    %108 = vmatpush.bf16.msra.mxu0 0
    %109 = vmatpush.bf16.msra.mxu0 0
    %110 = vmatpush.bf16.msra.mxu0 %v101
    %111 = vmatmul.bf16.gmra.mxu0 %v94
    %v112 = vpop.f32.mrf.mxu0
    %v113 = vadd.f32 %v85, %v112
    %v114 = vpop.f32.mrf.mxu0
    %115 = vdwg.mxu0
    %v116 = vmax.f32 %v113, 0.0
    %v117 = vpack.c.bf16 %v116, %v116
    %v118 = vld [vmem:[#allocation6] sm:$0xf]
    %v119 = vld [vmem:[#allocation6 + $0x4] sm:$0xf]
    %v120 = vld [vmem:[#allocation6 + $0x8] sm:$0xf]
    %v121 = vld [vmem:[#allocation6 + $0xc] sm:$0xf]
    %v122 = vld [vmem:[#allocation6 + $0x10] sm:$0xf]
    %v123 = vld [vmem:[#allocation6 + $0x14] sm:$0xf]
    %v124 = vld [vmem:[#allocation6 + $0x18] sm:$0xf]
    %v125 = vld [vmem:[#allocation6 + $0x1c] sm:$0xf]
    %v126 = vld [vmem:[#allocation6 + $0x20] sm:$0xf]
    %v127 = vld [vmem:[#allocation6 + $0x24] sm:$0xf]
    %v128 = vld [vmem:[#allocation6 + $0x28] sm:$0xf]
    %v129 = vld [vmem:[#allocation6 + $0x2c] sm:$0xf]
    %v130 = vld [vmem:[#allocation6 + $0x30] sm:$0xf]
    %v131 = vld [vmem:[#allocation6 + $0x34] sm:$0xf]
    %v132 = vld [vmem:[#allocation6 + $0x38] sm:$0xf]
    %v133 = vld [vmem:[#allocation6 + $0x3c] sm:$0xf]
    %s134 = scalar_lea.vmem [#allocation7], 1
    %v135 = vld [vmem:[%s134] sm:$0x1]
    %v137 = vperm.slane %v135, 0
    %v155 = vunpack.c.l.b16 %v118
    %v156 = vunpack.c.l.b16 %v119
    %v157 = vunpack.c.l.b16 %v120
    %v158 = vunpack.c.l.b16 %v121
    %v159 = vunpack.c.l.b16 %v122
    %v160 = vunpack.c.l.b16 %v123
    %v161 = vunpack.c.l.b16 %v124
    %v162 = vunpack.c.l.b16 %v125
    %v163 = vunpack.c.l.b16 %v126
    %v164 = vunpack.c.l.b16 %v127
    %v165 = vunpack.c.l.b16 %v128
    %v166 = vunpack.c.l.b16 %v129
    %v167 = vunpack.c.l.b16 %v130
    %v168 = vunpack.c.l.b16 %v131
    %v169 = vunpack.c.l.b16 %v132
    %v170 = vunpack.c.l.b16 %v133
    %v171 = vpack.c.b16 %v156, %v155
    %v172 = vpack.c.b16 %v158, %v157
    %v173 = vpack.c.b16 %v160, %v159
    %v174 = vpack.c.b16 %v162, %v161
    %v175 = vpack.c.b16 %v164, %v163
    %v176 = vpack.c.b16 %v166, %v165
    %v177 = vpack.c.b16 %v168, %v167
    %v178 = vpack.c.b16 %v170, %v169
    %187 = vmatpush.bf16.msra.mxu0 %v178
    %188 = vmatpush.bf16.msra.mxu0 %v177
    %189 = vmatpush.bf16.msra.mxu0 %v176
    %190 = vmatpush.bf16.msra.mxu0 %v175
    %191 = vmatpush.bf16.msra.mxu0 %v174
    %192 = vmatpush.bf16.msra.mxu0 %v173
    %193 = vmatpush.bf16.msra.mxu0 %v172
    %194 = vmatpush.bf16.msra.mxu0 %v171
    %195 = vmatmul.bf16.gmra.mxu0 %v117
    %v196 = vpop.f32.mrf.mxu0
    %v197 = vadd.f32 %v137, %v196
    %v198 = vpop.f32.mrf.mxu0
    %199 = vdwg.mxu0
    %v200 = vmax.f32 %v197, 0.0
    %v201 = vpack.c.bf16 %v200, %v200
    %s202 = scalar_lea.vmem [#allocation6], 64
    %v203 = vld [vmem:[%s202] sm:$0xf]
    %v204 = vld [vmem:[%s202 + $0x4] sm:$0xf]
    %v205 = vld [vmem:[%s202 + $0x8] sm:$0xf]
    %v206 = vld [vmem:[%s202 + $0xc] sm:$0xf]
    %v207 = vld [vmem:[%s202 + $0x10] sm:$0xf]
    %v208 = vld [vmem:[%s202 + $0x14] sm:$0xf]
    %v209 = vld [vmem:[%s202 + $0x18] sm:$0xf]
    %v210 = vld [vmem:[%s202 + $0x1c] sm:$0xf]
    %v211 = vld [vmem:[%s202 + $0x20] sm:$0xf]
    %v212 = vld [vmem:[%s202 + $0x24] sm:$0xf]
    %v213 = vld [vmem:[%s202 + $0x28] sm:$0xf]
    %v214 = vld [vmem:[%s202 + $0x2c] sm:$0xf]
    %v215 = vld [vmem:[%s202 + $0x30] sm:$0xf]
    %v216 = vld [vmem:[%s202 + $0x34] sm:$0xf]
    %v217 = vld [vmem:[%s202 + $0x38] sm:$0xf]
    %v218 = vld [vmem:[%s202 + $0x3c] sm:$0xf]
    %s219 = scalar_lea.vmem [#allocation7], 2
    %v220 = vld [vmem:[%s219] sm:$0x1]
    %v222 = vperm.slane %v220, 0
    %v240 = vunpack.c.l.b16 %v203
    %v241 = vunpack.c.l.b16 %v204
    %v242 = vunpack.c.l.b16 %v205
    %v243 = vunpack.c.l.b16 %v206
    %v244 = vunpack.c.l.b16 %v207
    %v245 = vunpack.c.l.b16 %v208
    %v246 = vunpack.c.l.b16 %v209
    %v247 = vunpack.c.l.b16 %v210
    %v248 = vunpack.c.l.b16 %v211
    %v249 = vunpack.c.l.b16 %v212
    %v250 = vunpack.c.l.b16 %v213
    %v251 = vunpack.c.l.b16 %v214
    %v252 = vunpack.c.l.b16 %v215
    %v253 = vunpack.c.l.b16 %v216
    %v254 = vunpack.c.l.b16 %v217
    %v255 = vunpack.c.l.b16 %v218
    %v256 = vpack.c.b16 %v241, %v240
    %v257 = vpack.c.b16 %v243, %v242
    %v258 = vpack.c.b16 %v245, %v244
    %v259 = vpack.c.b16 %v247, %v246
    %v260 = vpack.c.b16 %v249, %v248
    %v261 = vpack.c.b16 %v251, %v250
    %v262 = vpack.c.b16 %v253, %v252
    %v263 = vpack.c.b16 %v255, %v254
    %272 = vmatpush.bf16.msra.mxu0 %v263
    %273 = vmatpush.bf16.msra.mxu0 %v262
    %274 = vmatpush.bf16.msra.mxu0 %v261
    %275 = vmatpush.bf16.msra.mxu0 %v260
    %276 = vmatpush.bf16.msra.mxu0 %v259
    %277 = vmatpush.bf16.msra.mxu0 %v258
    %278 = vmatpush.bf16.msra.mxu0 %v257
    %279 = vmatpush.bf16.msra.mxu0 %v256
    %280 = vmatmul.bf16.gmra.mxu0 %v201
    %v281 = vpop.f32.mrf.mxu0
    %v282 = vadd.f32 %v222, %v281
    %v283 = vpop.f32.mrf.mxu0
    %284 = vdwg.mxu0
    %vm285 = vcmask 15360
    %286 = vst.msk [vmem:[%s4] sm:$0xff] %vm285, %v282
    // Predicated region
    $region34: #{tpu_custom_call.1} parent=1 // pred_check
      _
    $region35: #{tpu_custom_call.1} parent=1 // pred_check_branch
      %288 = sbr.rel (0) target = $region37
    $region36: #{tpu_custom_call.1} parent=1 // pred_region
      _
    $region37: #{tpu_custom_call.1} parent=1 // pred_fallthru
      _
    // Predicated region
    $region38: #{tpu_custom_call.1} parent=1 // pred_check
      _
    $region39: #{tpu_custom_call.1} parent=1 // pred_check_branch
      %290 = sbr.rel (0) target = $region41
    $region40: #{tpu_custom_call.1} parent=1 // pred_region
      _
    $region41: #{tpu_custom_call.1} parent=1 // pred_fallthru
      _
    %291 = vsyncpa [#allocation3], 1
    %292 = vsyncpa [#allocation5], 1
    %293 = vsyncpa [#allocation8], 1

</llo_original>
